<compile_context>
chip_gen: v5e
topology: v5e:2x2
jax: 0.10.0
libtpu: 0.0.40
codegen_flags: <defaults>
</compile_context>

<pallas_src>
import jax
import jax.numpy as jnp
from jax import lax
from jax.experimental import pallas as pl
from jax.experimental.pallas import tpu as pltpu

LANES = 128
SUBLANES = 8
MAX_TILE_INPUT_BYTES = 16 << 20   # inputs (2 arrays x 2 pipeline buffers) per grid step


def _round_up(x, m):
    return ((x + m - 1) // m) * m


def _vmem_capacity_bytes():
    # Trace-time hardware query; conservative (v7x per-TC) fallback if unavailable.
    try:
        return int(pltpu.get_tpu_info().vmem_capacity_bytes)
    except Exception:
        return 64 << 20


def _min_rows(dtype):
    # Sublane packing granularity: (8,128) f32, (16,128) bf16, (32,128) int8/fp8.
    return max(SUBLANES, 32 // max(1, jnp.dtype(dtype).itemsize))


def _make_kernel(threshold, penalty_multiplier, block_rows, fold_rows, rows_valid,
                 needs_mask):
    threshold = float(threshold)
    factor_hi = 1.0 + float(penalty_multiplier)   # constant-folded into the select
    use_sq_cmp = threshold >= 0.0                 # sq > thr^2 only valid for thr >= 0
    thr_sq = threshold * threshold

    def fold(x):
        # (block_rows, 128) -> (fold_rows, 128): fold_rows//8 independent accumulator
        # vregs, VPU adds only; the tiny cross-lane reduce happens in the XLA epilogue.
        return jnp.sum(x.reshape(block_rows // fold_rows, fold_rows, LANES), axis=0)

    def kernel(p_ref, t_ref, out_ref):
        # Inputs stream in native dtype; per-tile cast to f32 (hidden under DMA).
        diff = p_ref[...].astype(jnp.float32) - t_ref[...].astype(jnp.float32)
        sq = diff * diff
        if use_sq_cmp:
            hit = sq > thr_sq
        else:
            hit = jnp.abs(diff) > threshold
        contrib = sq * jnp.where(hit, factor_hi, 1.0)

        # Default path: unmasked fold (every block except, possibly, the last one).
        out_ref[...] = fold(contrib)

        if needs_mask:
            # Only the last grid block can overhang past the valid rows; overwrite its
            # partial with a row-masked fold. Row-level compare: no lane iota, no
            # flattened-index int32 overflow.
            @pl.when(pl.program_id(0) == pl.num_programs(0) - 1)
            def _():
                row = lax.broadcasted_iota(jnp.int32, (block_rows, LANES), 0)
                global_row = pl.program_id(0) * block_rows + row
                out_ref[...] = fold(jnp.where(global_row < rows_valid, contrib, 0.0))

    return kernel


def mse_deviation_loss(predictions, targets, threshold=1.0, penalty_multiplier=2.0):
    """Pallas TPU implementation of MSEDeviationLoss.forward."""
    assert predictions.shape == targets.shape
    n_true = int(predictions.size)
    assert n_true > 0

    p_flat = predictions.reshape(-1)
    t_flat = targets.reshape(-1)

    p_item = jnp.dtype(p_flat.dtype).itemsize
    t_item = jnp.dtype(t_flat.dtype).itemsize
    min_rows = max(_min_rows(p_flat.dtype), _min_rows(t_flat.dtype))
    tile_elems = min_rows * LANES

    # Tile-aligned prefix goes through the kernel; the (< tile_elems) tail is added by
    # a tiny plain-JAX epilogue (avoids materializing a full padded copy of both inputs).
    n_aligned = (n_true // tile_elems) * tile_elems
    n_tail = n_true - n_aligned

    total = jnp.float32(0.0)

    if n_aligned > 0:
        p_main = p_flat if n_tail == 0 else p_flat[:n_aligned]
        t_main = t_flat if n_tail == 0 else t_flat[:n_aligned]

        rows = n_aligned // LANES                      # multiple of min_rows
        p2 = p_main.reshape(rows, LANES)
        t2 = t_main.reshape(rows, LANES)

        # Block size: as large as the VMEM budget allows (<= 4 MiB/tile for f32 on
        # v7x), but keep >= ~4 grid steps where possible for megacore sharding.
        input_budget = min(MAX_TILE_INPUT_BYTES, _vmem_capacity_bytes() // 4)
        max_rows = max(min_rows,
                       (input_budget // (2 * LANES * (p_item + t_item)) // min_rows)
                       * min_rows)
        target_rows = _round_up(pl.cdiv(rows, 4), min_rows)
        block_rows = max(min_rows, min(max_rows, target_rows, rows))

        # Widest fold granularity (multiple of 8) that divides block_rows.
        fold_rows = next(fr for fr in (64, 32, 16, 8) if block_rows % fr == 0)

        nb = pl.cdiv(rows, block_rows)
        needs_mask = (rows % block_rows) != 0   # only the last block can overhang

        kernel = _make_kernel(threshold, penalty_multiplier, block_rows, fold_rows,
                              rows, needs_mask)

        in_tile_bytes = block_rows * LANES * (p_item + t_item)       # both inputs
        out_tile_bytes = fold_rows * LANES * 4
        vmem_limit = 2 * in_tile_bytes + 2 * out_tile_bytes + (2 << 20)

        partial_bytes = nb * fold_rows * LANES * 4
        cost = pl.CostEstimate(
            flops=8 * n_aligned,
            transcendentals=0,
            bytes_accessed=n_aligned * (p_item + t_item) + partial_bytes,
        )

        partials = pl.pallas_call(
            kernel,
            out_shape=jax.ShapeDtypeStruct((nb * fold_rows, LANES), jnp.float32),
            grid=(nb,),
            in_specs=[
                pl.BlockSpec((block_rows, LANES), lambda i: (i, 0)),
                pl.BlockSpec((block_rows, LANES), lambda i: (i, 0)),
            ],
            out_specs=pl.BlockSpec((fold_rows, LANES), lambda i: (i, 0)),
            compiler_params=pltpu.CompilerParams(
                # No cross-step state -> fully parallel grid (both TCs on v7x).
                dimension_semantics=("parallel",),
                vmem_limit_bytes=int(vmem_limit),
            ),
            cost_estimate=cost,
        )(p2, t2)

        total = total + jnp.sum(partials)

    if n_tail > 0:
        # < one vreg tile of elements: trivial plain-JAX epilogue.
        d = (p_flat[n_aligned:].astype(jnp.float32)
             - t_flat[n_aligned:].astype(jnp.float32))
        sq = d * d
        factor = jnp.where(jnp.abs(d) > jnp.float32(threshold),
                           jnp.float32(1.0 + penalty_multiplier), jnp.float32(1.0))
        total = total + jnp.sum(sq * factor)

    return total / jnp.float32(n_true)


def _reference(predictions, targets, threshold=1.0, penalty_multiplier=2.0):
    diff = predictions - targets
    mse = jnp.mean(diff**2)
    penalty = jnp.mean(
        jnp.where(jnp.abs(diff) > threshold, penalty_multiplier * diff**2, 0.0)
    )
    return mse + penalty


if __name__ == "__main__":
    key = jax.random.PRNGKey(0)
    k1, k2 = jax.random.split(key)

    # Small NCHW-like shapes consistent with a prediction/target pair.
    shape = (2, 4, 16, 16)
    predictions = jax.random.normal(k1, shape, dtype=jnp.float32) * 1.5
    targets = jax.random.normal(k2, shape, dtype=jnp.float32)

    loss = mse_deviation_loss(predictions, targets, threshold=1.0, penalty_multiplier=2.0)
    loss = jax.block_until_ready(loss)

    ref = _reference(predictions, targets, threshold=1.0, penalty_multiplier=2.0)
    assert jnp.allclose(loss, ref, rtol=1e-5, atol=1e-6), (loss, ref)

    print("KERNEL_OK")
</pallas_src>

<mosaic_0001>
module attributes {stable_mosaic.version = 11 : i64} {
  func.func @kernel(%arg0: i32, %arg1: memref<8x128xf32, #tpu.memory_space<vmem>>, %arg2: memref<8x128xf32, #tpu.memory_space<vmem>>, %arg3: memref<8x128xf32, #tpu.memory_space<vmem>>) attributes {dimension_semantics = [#tpu.dimension_semantics<parallel>], iteration_bounds = array<i64: 2>, scalar_prefetch = 0 : i64, scratch_operands = 0 : i64, tpu.core_type = #tpu.core_type<tc>, window_params = [{transform_indices = @transform_0, window_bounds = array<i64: 8, 128>}, {transform_indices = @transform_1, window_bounds = array<i64: 8, 128>}, {transform_indices = @transform_2, window_bounds = array<i64: 8, 128>}]} {
    %c0 = arith.constant 0 : index
    %c0_0 = arith.constant 0 : index
    %0 = vector.load %arg1[%c0, %c0_0] : memref<8x128xf32, #tpu.memory_space<vmem>>, vector<8x128xf32>
    %c0_1 = arith.constant 0 : index
    %c0_2 = arith.constant 0 : index
    %1 = vector.load %arg2[%c0_1, %c0_2] : memref<8x128xf32, #tpu.memory_space<vmem>>, vector<8x128xf32>
    %2 = arith.subf %0, %1 : vector<8x128xf32>
    %3 = arith.mulf %2, %2 : vector<8x128xf32>
    %cst = arith.constant 1.000000e+00 : f32
    %4 = vector.broadcast %cst : f32 to vector<8x128xf32>
    %5 = arith.cmpf ogt, %3, %4 : vector<8x128xf32>
    %cst_3 = arith.constant 3.000000e+00 : f32
    %cst_4 = arith.constant 1.000000e+00 : f32
    %6 = vector.broadcast %cst_3 : f32 to vector<8x128xf32>
    %7 = vector.broadcast %cst_4 : f32 to vector<8x128xf32>
    %8 = arith.select %5, %6, %7 : vector<8x128xi1>, vector<8x128xf32>
    %9 = arith.mulf %3, %8 : vector<8x128xf32>
    %10 = vector.shape_cast %9 : vector<8x128xf32> to vector<1x8x128xf32>
    %cst_5 = arith.constant dense<0.000000e+00> : vector<8x128xf32>
    %11 = vector.multi_reduction <add>, %10, %cst_5 [0] : vector<1x8x128xf32> to vector<8x128xf32>
    %c0_6 = arith.constant 0 : index
    %c0_7 = arith.constant 0 : index
    %12 = vector.load %arg3[%c0_6, %c0_7] : memref<8x128xf32, #tpu.memory_space<vmem>>, vector<8x128xf32>
    tpu.vector_store %arg3[%c0_6, %c0_7], %11 {strides = array<i32>} : memref<8x128xf32, #tpu.memory_space<vmem>>, vector<8x128xf32>,
    return
  }
  func.func @transform_0(%arg0: i32) -> (i32, i32) {
    %c0_i32 = arith.constant 0 : i32
    %c0_i32_0 = arith.constant 0 : i32
    return %arg0, %c0_i32 : i32, i32
  }
  func.func @transform_1(%arg0: i32) -> (i32, i32) {
    %c0_i32 = arith.constant 0 : i32
    %c0_i32_0 = arith.constant 0 : i32
    return %arg0, %c0_i32 : i32, i32
  }
  func.func @transform_2(%arg0: i32) -> (i32, i32) {
    %c0_i32 = arith.constant 0 : i32
    %c0_i32_0 = arith.constant 0 : i32
    return %arg0, %c0_i32 : i32, i32
  }
}

</mosaic_0001>

<llo_original>
// kernel: tpu_custom_call.1
$region0: #{tpu_custom_call.1}
  #allocation0 [shape = 'u32[]', space=smem, size = 0x4, offset = 0x4, fixed_abs, tag = 'smem constant byte address 0x4 - core index']
  #allocation1 [shape = 'u32[72,128]{1,0:T(1,128)}', space=vmem, size = 0x9000, scoped, tag = 'internal scratch']
  %s0 = inlined_call_operand.hbm [shape: f32[16,128], index: 0, kind: input, shape index: {}]
  %s1 = inlined_call_operand.hbm [shape: f32[16,128], index: 1, kind: input, shape index: {}]
  %s2 = inlined_call_operand.hbm [shape: f32[16,128], index: 2, kind: output, shape index: {}]
  %s3 = sld [smem:[#allocation0]]
  $region49: #{tpu_custom_call.1} parent=0
    _
  %s5 = ssub.s32 1, %s3
  %s6 = scalar_select 0, %s5, %s3
  $region1: #{tpu_custom_call.1} parent=0
    #allocation2 [shape = 'u8[8192]{0}', space=vmem, size = 0x2000, scoped, tag = 'input window, operand 0']
    #allocation3 [shape = 's32[2]{0}', space=sflag, size = 0x8, scoped, tag = 'scoped memory for tpu_custom_call.1']
    #allocation4 [shape = 's32[2]{0}', space=sflag, size = 0x8, scoped, tag = 'scoped memory for tpu_custom_call.1']
    #allocation5 [shape = 'u8[8192]{0}', space=vmem, size = 0x2000, scoped, tag = 'input window, operand 1']
    #allocation6 [shape = 's32[2]{0}', space=sflag, size = 0x8, scoped, tag = 'scoped memory for tpu_custom_call.1']
    #allocation7 [shape = 'u8[8192]{0}', space=vmem, size = 0x2000, scoped, tag = 'output window, operand 0']
    %7 = vsyncpa [#allocation3], 0
    %s8 = scalar_lea.sflag [#allocation3], 1
    %9 = vsyncpa %s8, 0
    %10 = vsyncpa [#allocation6], 0
    %s11 = scalar_lea.sflag [#allocation6], 1
    %12 = vsyncpa %s11, 0
    %13 = vsyncpa [#allocation4], 0
    %s14 = scalar_lea.sflag [#allocation4], 1
    %15 = vsyncpa %s14, 0
    loop: start=0, step=1, limit=4
    $region2: #{tpu_custom_call.1} parent=1 // loop_pre_header
      _
    $region3: #{tpu_custom_call.1} parent=1 // loop_header
      %s17 = sphi 0, %s21
      %p18 = scmp.ge.s32.totalorder %s17, 4
      %s27 = sphi 0, %s29
      %s30 = sphi 0, %s27
      %s31 = sphi 0, %s30
      %s47 = sphi 0, %s31
      %s53 = sphi 0, %s55
      %s56 = sphi 0, %s53
      %s57 = sphi 0, %s56
      %s73 = sphi 0, %s57
      %s79 = sphi 0, %s81
      %s82 = sphi 0, %s79
      %s83 = sphi 0, %s82
      %s99 = sphi 0, %s83
    $region4: #{tpu_custom_call.1} parent=1 // loop_header_branch
      %20 = sbr.rel (%p18) target = $region8
    $region5: #{tpu_custom_call.1} parent=1 // loop_body
      %s22 = ssub.s32 %s17, 1
      %s23 = ssub.s32 %s17, 2
      %s24 = sadd.s32 %s17, 1
      %s25 = ssub.s32 %s17, %s24
      %p26 = scmp.eq.s32.totalorder %s25, 0
      %s28 = sadd.s32 %s27, 1
      %s29 = scalar_select %p26, %s27, %s28
      %p32 = pneg %p26
      %p33 = scmp.eq.s32.totalorder %s17, 1
      %p34 = por %p32, %p33
      %p35 = scmp.ne.s32.totalorder %s27, %s30
      %p36 = scmp.eq.s32.totalorder %s17, 0
      %p37 = por %p35, %p36
      %p38 = scmp.ne.s32.totalorder %s27, %s30
      %p39 = scmp.eq.s32.totalorder %s22, 1
      %p40 = por %p38, %p39
      %p41 = scmp.ne.s32.totalorder %s30, %s31
      %p42 = scmp.eq.s32.totalorder %s22, 0
      %p43 = por %p41, %p42
      %p44 = scmp.ne.s32.totalorder %s30, %s31
      %p45 = scmp.eq.s32.totalorder %s23, 1
      %p46 = por %p44, %p45
      %p48 = scmp.ne.s32.totalorder %s31, %s47
      %p49 = scmp.eq.s32.totalorder %s23, 0
      %p50 = por %p48, %p49
      %s51 = ssub.s32 %s17, %s24
      %p52 = scmp.eq.s32.totalorder %s51, 0
      %s54 = sadd.s32 %s53, 1
      %s55 = scalar_select %p52, %s53, %s54
      %p58 = pneg %p52
      %p59 = scmp.eq.s32.totalorder %s17, 1
      %p60 = por %p58, %p59
      %p61 = scmp.ne.s32.totalorder %s53, %s56
      %p62 = scmp.eq.s32.totalorder %s17, 0
      %p63 = por %p61, %p62
      %p64 = scmp.ne.s32.totalorder %s53, %s56
      %p65 = scmp.eq.s32.totalorder %s22, 1
      %p66 = por %p64, %p65
      %p67 = scmp.ne.s32.totalorder %s56, %s57
      %p68 = scmp.eq.s32.totalorder %s22, 0
      %p69 = por %p67, %p68
      %p70 = scmp.ne.s32.totalorder %s56, %s57
      %p71 = scmp.eq.s32.totalorder %s23, 1
      %p72 = por %p70, %p71
      %p74 = scmp.ne.s32.totalorder %s57, %s73
      %p75 = scmp.eq.s32.totalorder %s23, 0
      %p76 = por %p74, %p75
      %s77 = ssub.s32 %s17, %s24
      %p78 = scmp.eq.s32.totalorder %s77, 0
      %s80 = sadd.s32 %s79, 1
      %s81 = scalar_select %p78, %s79, %s80
      %p84 = pneg %p78
      %p85 = scmp.eq.s32.totalorder %s17, 1
      %p86 = por %p84, %p85
      %p87 = scmp.ne.s32.totalorder %s79, %s82
      %p88 = scmp.eq.s32.totalorder %s17, 0
      %p89 = por %p87, %p88
      %p90 = scmp.ne.s32.totalorder %s79, %s82
      %p91 = scmp.eq.s32.totalorder %s22, 1
      %p92 = por %p90, %p91
      %p93 = scmp.ne.s32.totalorder %s82, %s83
      %p94 = scmp.eq.s32.totalorder %s22, 0
      %p95 = por %p93, %p94
      %p96 = scmp.ne.s32.totalorder %s82, %s83
      %p97 = scmp.eq.s32.totalorder %s23, 1
      %p98 = por %p96, %p97
      %p100 = scmp.ne.s32.totalorder %s83, %s99
      %p101 = scmp.eq.s32.totalorder %s23, 0
      %p102 = por %p100, %p101
      %p103 = scmp.le.s32.totalorder 1, %s17
      %p104 = scmp.lt.s32.totalorder %s17, 3
      %p105 = pnand %p103, %p104
      %p106 = pneg %p105
      // Predicated region
      $region9: #{tpu_custom_call.1} parent=5 // pred_check
        _
      $region10: #{tpu_custom_call.1} parent=5 // pred_check_branch
        %108 = sbr.rel (%p105) target = $region12
      $region11: #{tpu_custom_call.1} parent=5 // pred_region
        %s109 = ssub.s32 %s17, 1
      $region12: #{tpu_custom_call.1} parent=5 // pred_fallthru
        _
      %p110 = scmp.lt.s32.totalorder %s17, 2
      // Predicated region
      $region13: #{tpu_custom_call.1} parent=5 // pred_check
        %p111 = pneg %p110
      $region14: #{tpu_custom_call.1} parent=5 // pred_check_branch
        %113 = sbr.rel (%p111) target = $region16
      $region15: #{tpu_custom_call.1} parent=5 // pred_region
        // Predicated region
        $region17: #{tpu_custom_call.1} parent=15 // pred_check
          %p114 = pneg %p37
        $region18: #{tpu_custom_call.1} parent=15 // pred_check_branch
          %116 = sbr.rel (%p114) target = $region20
        $region19: #{tpu_custom_call.1} parent=15 // pred_region
          %s117 = sand.u32 %s27, 1
          %s118 = scalar_lea.sflag [#allocation3], %s117
          %s119 = sand.u32 %s27, 1
          %s120 = smul.addr %s119, 8
          %s121 = scalar_lea.vmem [#allocation2], %s120
          %123 = vsyncadd %s118, 0
          %s124 = smul.addr %s17, 8
          %s125 = scalar_lea.hbm %s0, %s124
          %s127 = sshll.u32 %s125, 4
          %s128 = int_to_ptr.hbm [resolvable:$true] %s127
          %s129 = sshll.u32 %s121, 4
          %s130 = int_to_ptr.vmem [resolvable:$true] %s129
          %132 = dma.hbm_to_vmem [thread:$0]  %s128, 128, %s130, %s118
        $region20: #{tpu_custom_call.1} parent=15 // pred_fallthru
          _
        // Predicated region
        $region21: #{tpu_custom_call.1} parent=15 // pred_check
          %p133 = pneg %p63
        $region22: #{tpu_custom_call.1} parent=15 // pred_check_branch
          %135 = sbr.rel (%p133) target = $region24
        $region23: #{tpu_custom_call.1} parent=15 // pred_region
          %s136 = sand.u32 %s53, 1
          %s137 = scalar_lea.sflag [#allocation6], %s136
          %s138 = sand.u32 %s53, 1
          %s139 = smul.addr %s138, 8
          %s140 = scalar_lea.vmem [#allocation5], %s139
          %142 = vsyncadd %s137, 0
          %s143 = smul.addr %s17, 8
          %s144 = scalar_lea.hbm %s1, %s143
          %s146 = sshll.u32 %s144, 4
          %s147 = int_to_ptr.hbm [resolvable:$true] %s146
          %s148 = sshll.u32 %s140, 4
          %s149 = int_to_ptr.vmem [resolvable:$true] %s148
          %151 = dma.hbm_to_vmem [thread:$0]  %s147, 128, %s149, %s137
        $region24: #{tpu_custom_call.1} parent=15 // pred_fallthru
          _
      $region16: #{tpu_custom_call.1} parent=5 // pred_fallthru
        _
      %p152 = scmp.le.s32.totalorder 1, %s17
      %p153 = scmp.lt.s32.totalorder %s17, 3
      %p154 = pnand %p152, %p153
      %p155 = pneg %p154
      // Predicated region
      $region25: #{tpu_custom_call.1} parent=5 // pred_check
        _
      $region26: #{tpu_custom_call.1} parent=5 // pred_check_branch
        %157 = sbr.rel (%p154) target = $region28
      $region27: #{tpu_custom_call.1} parent=5 // pred_region
        %s158 = ssub.s32 %s17, 1
        %s159 = sand.u32 %s30, 1
        %s160 = scalar_lea.sflag [#allocation3], %s159
        %s161 = sand.u32 %s30, 1
        %s162 = smul.addr %s161, 8
        %s163 = scalar_lea.vmem [#allocation2], %s162
        // Predicated region
        $region29: #{tpu_custom_call.1} parent=27 // pred_check
          %p164 = pneg %p43
        $region30: #{tpu_custom_call.1} parent=27 // pred_check_branch
          %166 = sbr.rel (%p164) target = $region32
        $region31: #{tpu_custom_call.1} parent=27 // pred_region
          %168 = dma.done %s160, 128
        $region32: #{tpu_custom_call.1} parent=27 // pred_fallthru
          _
        %s169 = sand.u32 %s56, 1
        %s170 = scalar_lea.sflag [#allocation6], %s169
        %s171 = sand.u32 %s56, 1
        %s172 = smul.addr %s171, 8
        %s173 = scalar_lea.vmem [#allocation5], %s172
        // Predicated region
        $region33: #{tpu_custom_call.1} parent=27 // pred_check
          %p174 = pneg %p69
        $region34: #{tpu_custom_call.1} parent=27 // pred_check_branch
          %176 = sbr.rel (%p174) target = $region36
        $region35: #{tpu_custom_call.1} parent=27 // pred_region
          %178 = dma.done %s170, 128
        $region36: #{tpu_custom_call.1} parent=27 // pred_fallthru
          _
        %s179 = sand.u32 %s30, 1
        %s180 = scalar_lea.sflag [#allocation3], %s179
        %s181 = sand.u32 %s30, 1
        %s182 = smul.addr %s181, 8
        %s183 = scalar_lea.vmem [#allocation2], %s182
        %p184 = pneg %p43
        %p185 = pneg %p40
        %s186 = sand.u32 %s56, 1
        %s187 = scalar_lea.sflag [#allocation6], %s186
        %s188 = sand.u32 %s56, 1
        %s189 = smul.addr %s188, 8
        %s190 = scalar_lea.vmem [#allocation5], %s189
        %p191 = pneg %p69
        %p192 = pneg %p66
        %p193 = pneg %p95
        %p194 = pneg %p92
        %s195 = sand.u32 %s82, 1
        %s196 = scalar_lea.sflag [#allocation4], %s195
        %s197 = sand.u32 %s82, 1
        %s198 = smul.addr %s197, 8
        %s199 = scalar_lea.vmem [#allocation7], %s198
        %v200 = vld [vmem:[%s163] sm:$0xff]
        %v201 = vld [vmem:[%s173] sm:$0xff]
        %v202 = vsub.f32 %v200, %v201
        %v203 = vmul.f32 %v202, %v202
        %vm204 = vcmp.gt.f32.partialorder %v203, 1.0
        %v205 = vsel %vm204, 3.0, 1.0
        %v206 = vmul.f32 %v203, %v205
        %v207 = vadd.f32 %v206, 0.0
        %208 = vst [vmem:[%s199] sm:$0xff] %v207
        %s209 = sand.u32 %s82, 1
        %s210 = scalar_lea.sflag [#allocation4], %s209
        %s211 = sand.u32 %s82, 1
        %s212 = smul.addr %s211, 8
        %s213 = scalar_lea.vmem [#allocation7], %s212
        // Predicated region
        $region37: #{tpu_custom_call.1} parent=27 // pred_check
          %p214 = pneg %p92
        $region38: #{tpu_custom_call.1} parent=27 // pred_check_branch
          %216 = sbr.rel (%p214) target = $region40
        $region39: #{tpu_custom_call.1} parent=27 // pred_region
          %218 = vsyncadd %s210, 0
          %s219 = smul.addr %s22, 8
          %s220 = scalar_lea.hbm %s2, %s219
          %s222 = sshll.u32 %s213, 4
          %s223 = int_to_ptr.vmem [resolvable:$true] %s222
          %s224 = sshll.u32 %s220, 4
          %s225 = int_to_ptr.hbm [resolvable:$true] %s224
          %227 = dma.vmem_to_hbm [thread:$0]  %s223, 128, %s225, %s210
        $region40: #{tpu_custom_call.1} parent=27 // pred_fallthru
          _
      $region28: #{tpu_custom_call.1} parent=5 // pred_fallthru
        _
      %p228 = scmp.le.s32.totalorder 2, %s17
      // Predicated region
      $region41: #{tpu_custom_call.1} parent=5 // pred_check
        %p229 = pneg %p228
      $region42: #{tpu_custom_call.1} parent=5 // pred_check_branch
        %231 = sbr.rel (%p229) target = $region44
      $region43: #{tpu_custom_call.1} parent=5 // pred_region
        %s232 = ssub.s32 %s17, 2
        // Predicated region
        $region45: #{tpu_custom_call.1} parent=43 // pred_check
          %p233 = pneg %p98
        $region46: #{tpu_custom_call.1} parent=43 // pred_check_branch
          %235 = sbr.rel (%p233) target = $region48
        $region47: #{tpu_custom_call.1} parent=43 // pred_region
          %s236 = sand.u32 %s83, 1
          %s237 = scalar_lea.sflag [#allocation4], %s236
          %s238 = sand.u32 %s83, 1
          %s239 = smul.addr %s238, 8
          %s240 = scalar_lea.vmem [#allocation7], %s239
          %242 = dma.done %s237, 128
        $region48: #{tpu_custom_call.1} parent=43 // pred_fallthru
          _
      $region44: #{tpu_custom_call.1} parent=5 // pred_fallthru
        _
    $region6: #{tpu_custom_call.1} parent=1 // loop_footer
      %s21 = sadd.s32 1, %s17
    $region7: #{tpu_custom_call.1} parent=1 // loop_footer_branch
      %16 = sbr.rel target = $region3
    $region8: #{tpu_custom_call.1} parent=1 // loop_exit
      _
    %243 = vsyncpa [#allocation3], 1
    %s244 = scalar_lea.sflag [#allocation3], 1
    %245 = vsyncpa %s244, 1
    %246 = vsyncpa [#allocation6], 1
    %s247 = scalar_lea.sflag [#allocation6], 1
    %248 = vsyncpa %s247, 1
    %249 = vsyncpa [#allocation4], 1
    %s250 = scalar_lea.sflag [#allocation4], 1
    %251 = vsyncpa %s250, 1

</llo_original>
